<compile_context>
chip_gen: v7x
topology: tpu7x:2x2x1
jax: 0.10.0
libtpu: 0.0.40
codegen_flags: <defaults>
</compile_context>

<pallas_src>
import math

import jax
import jax.numpy as jnp
from jax.experimental import pallas as pl
from jax.experimental.pallas import tpu as pltpu


def _choose_tq(L, H, budget_bytes=24 << 20):
    """Largest query tile that divides L and keeps the double-buffered fp32
    score block (2 * H * TQ * L * 4 bytes) under the VMEM budget."""
    for tq in (1024, 512, 256, 128, 64, 32, 16, 8):
        if tq <= L and L % tq == 0 and 2 * H * tq * L * 4 <= budget_bytes:
            return tq
    return L  # tiny / awkward L: single full tile


def _sdpa_kernel(q_ref, k_ref, v_ref, rmask_ref, cmask_ref, coef_ref,
                 o_ref, s_ref):
    # Block shapes:
    #   q_ref      (1, H, TQ, D)
    #   k_ref/v_ref(1, H, L,  D)
    #   rmask_ref  (1, TQ, 1)     query-row padding mask (already row layout)
    #   cmask_ref  (1, 1, L)      key-column padding mask
    #   coef_ref   (1, 1, L)      modality mixing coefficients
    #   o_ref      (1, H, TQ, D)
    #   s_ref      (1, H, TQ, L)
    D = q_ref.shape[-1]
    scale = jnp.float32(1.0 / math.sqrt(D))

    # Pre-scale q (cheaper than scaling the (TQ, L) score afterwards).
    q = q_ref[0].astype(jnp.float32) * scale          # (H, TQ, D)
    k = k_ref[0]                                      # (H, L,  D)
    v = v_ref[0]                                      # (H, L,  D)
    rmask = rmask_ref[0]                              # (TQ, 1) -> bcast rows
    cmask = cmask_ref[0]                              # (1,  L) -> bcast cols
    coef = coef_ref[0]                                # (1,  L)

    # Batched QK^T over heads on the MXU.
    score = jnp.einsum("hqd,hkd->hqk", q, k.astype(jnp.float32),
                       preferred_element_type=jnp.float32)  # (H, TQ, L)

    neg = jnp.float32(-10000.0)
    # masked_fill(padding_mask.unsqueeze(-1) == 0, -10000): mask query rows.
    score = jnp.where(rmask > 0.5, score, neg)
    # masked_fill(padding_mask.unsqueeze(1) == 0, -10000): mask key columns.
    score = jnp.where(cmask > 0.5, score, neg)

    # Numerically-stable softmax over the key axis.
    smax = jnp.max(score, axis=-1, keepdims=True)
    p = jnp.exp(score - smax)
    p = p * pl.reciprocal(jnp.sum(p, axis=-1, keepdims=True), approx=True)

    # score = score * attention_coefficients (broadcast along key axis).
    p = p * coef

    # PV on the MXU.
    out = jnp.einsum("hqk,hkd->hqd", p.astype(v.dtype), v,
                     preferred_element_type=jnp.float32)    # (H, TQ, D)

    s_ref[0] = p.astype(s_ref.dtype)
    o_ref[0] = out.astype(o_ref.dtype)
    # TODO(synk): for D<128 a heads-last (B, L, H*D) output layout would make
    # stores lane-dense, but the module contract returns (B, H, L, D).


def custom_scale_dot_product_attention(q, k, v, text_mask, audio_mask, e=1e-12):
    """Returns (v_out, score) with the semantics of the PyTorch module.

    q, k, v    : (B, H, L, D)
    text_mask  : (B, L_text)   0/1 float
    audio_mask : (B, L_audio)  0/1 float,  L_text + L_audio == L
    """
    del e  # unused by the reference forward as well
    B, H, L, D = q.shape

    # --- cheap glue in plain JAX: padding mask + modality mixing coefficients
    padding_mask = jnp.concatenate([text_mask, audio_mask], axis=1)          # (B, L)
    text_lengths = jnp.sum(text_mask, axis=1)                                # (B,)
    audio_lengths = jnp.sum(audio_mask, axis=1)                              # (B,)
    total_lengths = text_lengths + audio_lengths
    text_coefficients = (total_lengths / (2.0 * text_lengths))[:, None]      # (B, 1)
    audio_coefficients = (total_lengths / (2.0 * audio_lengths))[:, None]    # (B, 1)
    attention_coefficients = jnp.concatenate(
        [text_mask * text_coefficients, audio_mask * audio_coefficients], axis=1
    )                                                                        # (B, L)

    row_mask = padding_mask[:, :, None].astype(jnp.float32)                  # (B, L, 1)
    col_mask = padding_mask[:, None, :].astype(jnp.float32)                  # (B, 1, L)
    coef = attention_coefficients[:, None, :].astype(jnp.float32)            # (B, 1, L)

    TQ = _choose_tq(L, H)
    grid = (B, L // TQ)

    q_spec = pl.BlockSpec((1, H, TQ, D), lambda b, t: (b, 0, t, 0))
    kv_spec = pl.BlockSpec((1, H, L, D), lambda b, t: (b, 0, 0, 0))
    rmask_spec = pl.BlockSpec((1, TQ, 1), lambda b, t: (b, t, 0))
    vec_spec = pl.BlockSpec((1, 1, L), lambda b, t: (b, 0, 0))

    out_shapes = (
        jax.ShapeDtypeStruct((B, H, L, D), q.dtype),   # v_out
        jax.ShapeDtypeStruct((B, H, L, L), q.dtype),   # score
    )
    out_specs = (
        pl.BlockSpec((1, H, TQ, D), lambda b, t: (b, 0, t, 0)),
        pl.BlockSpec((1, H, TQ, L), lambda b, t: (b, 0, t, 0)),
    )

    v_out, score = pl.pallas_call(
        _sdpa_kernel,
        out_shape=out_shapes,
        grid=grid,
        in_specs=[q_spec, kv_spec, kv_spec, rmask_spec, vec_spec, vec_spec],
        out_specs=out_specs,
        compiler_params=pltpu.CompilerParams(
            dimension_semantics=("parallel", "parallel"),
            vmem_limit_bytes=48 * 1024 * 1024,
        ),
    )(q, k, v, row_mask, col_mask, coef)
    return v_out, score


def _reference(q, k, v, text_mask, audio_mask):
    """Pure-JAX reference mirroring the PyTorch forward, for validation."""
    B, H, L, D = q.shape
    score = jnp.einsum("bhld,bhmd->bhlm", q, k) / math.sqrt(D)
    padding_mask = jnp.concatenate([text_mask, audio_mask], axis=1)[:, None, :]  # (B,1,L)
    score = jnp.where(padding_mask[..., None] == 0, -10000.0, score)
    score = jnp.where(padding_mask[:, :, None, :] == 0, -10000.0, score)
    score = jax.nn.softmax(score, axis=-1)
    tl = jnp.sum(text_mask, axis=1)
    al = jnp.sum(audio_mask, axis=1)
    tot = tl + al
    tw = text_mask * (tot / (2 * tl))[:, None]
    aw = audio_mask * (tot / (2 * al))[:, None]
    coef = jnp.concatenate([tw, aw], axis=1)[:, None, None, :]
    score = score * coef
    out = jnp.einsum("bhlm,bhmd->bhld", score, v)
    return out, score


if __name__ == "__main__":
    B, H, L_text, L_audio, D = 2, 2, 8, 8, 32
    L = L_text + L_audio

    key = jax.random.PRNGKey(0)
    kq, kk, kv = jax.random.split(key, 3)
    q = jax.random.normal(kq, (B, H, L, D), dtype=jnp.float32)
    k = jax.random.normal(kk, (B, H, L, D), dtype=jnp.float32)
    v = jax.random.normal(kv, (B, H, L, D), dtype=jnp.float32)

    # Deterministic 0/1 padding masks (valid prefix per batch element).
    text_valid = jnp.array([6, 8], dtype=jnp.int32)
    audio_valid = jnp.array([5, 7], dtype=jnp.int32)
    text_mask = (jnp.arange(L_text)[None, :] < text_valid[:, None]).astype(jnp.float32)
    audio_mask = (jnp.arange(L_audio)[None, :] < audio_valid[:, None]).astype(jnp.float32)

    out, score = custom_scale_dot_product_attention(q, k, v, text_mask, audio_mask)
    jax.block_until_ready((out, score))

    out_ref, score_ref = _reference(q, k, v, text_mask, audio_mask)
    # Tolerances loosened slightly vs. exact division because the softmax
    # denominator uses the EUP approximate reciprocal (per perf feedback).
    assert jnp.allclose(out, out_ref, atol=5e-3, rtol=5e-3)
    assert jnp.allclose(score, score_ref, atol=5e-4, rtol=5e-3)

    print("KERNEL_OK")
</pallas_src>

<mosaic_0001>
module attributes {stable_mosaic.version = 11 : i64} {
  func.func @_sdpa_kernel(%arg0: i32, %arg1: i32, %arg2: memref<1x2x16x32xf32, #tpu.memory_space<vmem>>, %arg3: memref<1x2x16x32xf32, #tpu.memory_space<vmem>>, %arg4: memref<1x2x16x32xf32, #tpu.memory_space<vmem>>, %arg5: memref<1x16x1xf32, #tpu.memory_space<vmem>>, %arg6: memref<1x1x16xf32, #tpu.memory_space<vmem>>, %arg7: memref<1x1x16xf32, #tpu.memory_space<vmem>>, %arg8: memref<1x2x16x32xf32, #tpu.memory_space<vmem>>, %arg9: memref<1x2x16x16xf32, #tpu.memory_space<vmem>>) attributes {dimension_semantics = [#tpu.dimension_semantics<parallel>, #tpu.dimension_semantics<parallel>], iteration_bounds = array<i64: 2, 1>, scalar_prefetch = 0 : i64, scratch_operands = 0 : i64, tpu.core_type = #tpu.core_type<tc>, window_params = [{transform_indices = @transform_0, window_bounds = array<i64: 1, 2, 16, 32>}, {transform_indices = @transform_1, window_bounds = array<i64: 1, 2, 16, 32>}, {transform_indices = @transform_2, window_bounds = array<i64: 1, 2, 16, 32>}, {transform_indices = @transform_3, window_bounds = array<i64: 1, 16, 1>}, {transform_indices = @transform_4, window_bounds = array<i64: 1, 1, 16>}, {transform_indices = @transform_5, window_bounds = array<i64: 1, 1, 16>}, {transform_indices = @transform_6, window_bounds = array<i64: 1, 2, 16, 32>}, {transform_indices = @transform_7, window_bounds = array<i64: 1, 2, 16, 16>}]} {
    %c0 = arith.constant 0 : index
    %c0_0 = arith.constant 0 : index
    %c0_1 = arith.constant 0 : index
    %c0_2 = arith.constant 0 : index
    %0 = vector.load %arg2[%c0, %c0_0, %c0_1, %c0_2] : memref<1x2x16x32xf32, #tpu.memory_space<vmem>>, vector<1x2x16x32xf32>
    %1 = vector.shape_cast %0 : vector<1x2x16x32xf32> to vector<2x16x32xf32>
    %cst = arith.constant 0.176776692 : f32
    %2 = vector.broadcast %cst : f32 to vector<2x16x32xf32>
    %3 = arith.mulf %1, %2 : vector<2x16x32xf32>
    %c0_3 = arith.constant 0 : index
    %c0_4 = arith.constant 0 : index
    %c0_5 = arith.constant 0 : index
    %c0_6 = arith.constant 0 : index
    %4 = vector.load %arg3[%c0_3, %c0_4, %c0_5, %c0_6] : memref<1x2x16x32xf32, #tpu.memory_space<vmem>>, vector<1x2x16x32xf32>
    %5 = vector.shape_cast %4 : vector<1x2x16x32xf32> to vector<2x16x32xf32>
    %c0_7 = arith.constant 0 : index
    %c0_8 = arith.constant 0 : index
    %c0_9 = arith.constant 0 : index
    %c0_10 = arith.constant 0 : index
    %6 = vector.load %arg4[%c0_7, %c0_8, %c0_9, %c0_10] : memref<1x2x16x32xf32, #tpu.memory_space<vmem>>, vector<1x2x16x32xf32>
    %7 = vector.shape_cast %6 : vector<1x2x16x32xf32> to vector<2x16x32xf32>
    %c0_11 = arith.constant 0 : index
    %c0_12 = arith.constant 0 : index
    %c0_13 = arith.constant 0 : index
    %8 = vector.load %arg5[%c0_11, %c0_12, %c0_13] : memref<1x16x1xf32, #tpu.memory_space<vmem>>, vector<1x16x1xf32>
    %9 = vector.shape_cast %8 : vector<1x16x1xf32> to vector<16x1xf32>
    %c0_14 = arith.constant 0 : index
    %c0_15 = arith.constant 0 : index
    %c0_16 = arith.constant 0 : index
    %10 = vector.load %arg6[%c0_14, %c0_15, %c0_16] : memref<1x1x16xf32, #tpu.memory_space<vmem>>, vector<1x1x16xf32>
    %11 = vector.shape_cast %10 : vector<1x1x16xf32> to vector<1x16xf32>
    %c0_17 = arith.constant 0 : index
    %c0_18 = arith.constant 0 : index
    %c0_19 = arith.constant 0 : index
    %12 = vector.load %arg7[%c0_17, %c0_18, %c0_19] : memref<1x1x16xf32, #tpu.memory_space<vmem>>, vector<1x1x16xf32>
    %13 = vector.shape_cast %12 : vector<1x1x16xf32> to vector<1x16xf32>
    "tpu.trace_start"() <{level = 10 : i32, message = "hqd,hkd->hqk"}> : () -> ()
    %cst_20 = arith.constant dense<0.000000e+00> : vector<2x16x16xf32>
    %14 = tpu.matmul %3, %5, %cst_20 {dimension_numbers = #tpu.dot_dimension_numbers<[2], [2], [1], [1], [0, 0, 0, 1, 1, 1], [0], [0]>} : vector<2x16x32xf32>, vector<2x16x32xf32>, vector<2x16x16xf32> -> vector<2x16x16xf32>
    %cst_21 = arith.constant 5.000000e-01 : f32
    "tpu.trace_stop"() : () -> ()
    %15 = vector.broadcast %cst_21 : f32 to vector<16x1xf32>
    %16 = arith.cmpf ogt, %9, %15 : vector<16x1xf32>
    %cst_22 = arith.constant -1.000000e+04 : f32
    %17 = vector.shape_cast %16 : vector<16x1xi1> to vector<1x16x1xi1>
    %18 = vector.broadcast %17 : vector<1x16x1xi1> to vector<2x16x16xi1>
    %19 = vector.broadcast %cst_22 : f32 to vector<2x16x16xf32>
    %20 = arith.select %18, %14, %19 : vector<2x16x16xi1>, vector<2x16x16xf32>
    %cst_23 = arith.constant 5.000000e-01 : f32
    %21 = vector.broadcast %cst_23 : f32 to vector<1x16xf32>
    %22 = arith.cmpf ogt, %11, %21 : vector<1x16xf32>
    %cst_24 = arith.constant -1.000000e+04 : f32
    %23 = vector.shape_cast %22 : vector<1x16xi1> to vector<1x1x16xi1>
    %24 = vector.broadcast %23 : vector<1x1x16xi1> to vector<2x16x16xi1>
    %25 = vector.broadcast %cst_24 : f32 to vector<2x16x16xf32>
    %26 = arith.select %24, %20, %25 : vector<2x16x16xi1>, vector<2x16x16xf32>
    %cst_25 = arith.constant dense<0xFF800000> : vector<2x16xf32>
    %27 = vector.multi_reduction <maximumf>, %26, %cst_25 [2] : vector<2x16x16xf32> to vector<2x16xf32>
    %28 = vector.shape_cast %27 : vector<2x16xf32> to vector<2x16x1xf32>
    %29 = vector.broadcast %28 : vector<2x16x1xf32> to vector<2x16x16xf32>
    %30 = arith.subf %26, %29 : vector<2x16x16xf32>
    %31 = math.exp %30 : vector<2x16x16xf32>
    %cst_26 = arith.constant dense<0.000000e+00> : vector<2x16xf32>
    %32 = vector.multi_reduction <add>, %31, %cst_26 [2] : vector<2x16x16xf32> to vector<2x16xf32>
    %33 = vector.shape_cast %32 : vector<2x16xf32> to vector<2x16x1xf32>
    %34 = tpu.reciprocal %33 {approx = true} : vector<2x16x1xf32> -> vector<2x16x1xf32>
    %35 = vector.broadcast %34 : vector<2x16x1xf32> to vector<2x16x16xf32>
    %36 = arith.mulf %31, %35 : vector<2x16x16xf32>
    %37 = vector.shape_cast %13 : vector<1x16xf32> to vector<1x1x16xf32>
    %38 = vector.broadcast %37 : vector<1x1x16xf32> to vector<2x16x16xf32>
    %39 = arith.mulf %36, %38 : vector<2x16x16xf32>
    "tpu.trace_start"() <{level = 10 : i32, message = "hqk,hkd->hqd"}> : () -> ()
    %cst_27 = arith.constant dense<0.000000e+00> : vector<2x16x32xf32>
    %40 = tpu.matmul %39, %7, %cst_27 {dimension_numbers = #tpu.dot_dimension_numbers<[2], [1], [1], [2], [0, 0, 0, 1, 1, 2], [0], [0]>} : vector<2x16x16xf32>, vector<2x16x32xf32>, vector<2x16x32xf32> -> vector<2x16x32xf32>
    "tpu.trace_stop"() : () -> ()
    %c0_28 = arith.constant 0 : index
    %c0_29 = arith.constant 0 : index
    %c0_30 = arith.constant 0 : index
    %c0_31 = arith.constant 0 : index
    %41 = vector.load %arg9[%c0_28, %c0_29, %c0_30, %c0_31] : memref<1x2x16x16xf32, #tpu.memory_space<vmem>>, vector<1x2x16x16xf32>
    %42 = vector.shape_cast %41 : vector<1x2x16x16xf32> to vector<2x16x16xf32>
    %43 = vector.shape_cast %39 : vector<2x16x16xf32> to vector<1x2x16x16xf32>
    tpu.vector_store %arg9[%c0_28, %c0_29, %c0_30, %c0_31], %43 {strides = array<i32>} : memref<1x2x16x16xf32, #tpu.memory_space<vmem>>, vector<1x2x16x16xf32>,
    %c0_32 = arith.constant 0 : index
    %c0_33 = arith.constant 0 : index
    %c0_34 = arith.constant 0 : index
    %c0_35 = arith.constant 0 : index
    %44 = vector.load %arg8[%c0_32, %c0_33, %c0_34, %c0_35] : memref<1x2x16x32xf32, #tpu.memory_space<vmem>>, vector<1x2x16x32xf32>
    %45 = vector.shape_cast %44 : vector<1x2x16x32xf32> to vector<2x16x32xf32>
    %46 = vector.shape_cast %40 : vector<2x16x32xf32> to vector<1x2x16x32xf32>
    tpu.vector_store %arg8[%c0_32, %c0_33, %c0_34, %c0_35], %46 {strides = array<i32>} : memref<1x2x16x32xf32, #tpu.memory_space<vmem>>, vector<1x2x16x32xf32>,
    return
  }
  func.func @transform_0(%arg0: i32, %arg1: i32) -> (i32, i32, i32, i32) {
    %c0_i32 = arith.constant 0 : i32
    %c0_i32_0 = arith.constant 0 : i32
    %c0_i32_1 = arith.constant 0 : i32
    return %arg0, %c0_i32, %arg1, %c0_i32_0 : i32, i32, i32, i32
  }
  func.func @transform_1(%arg0: i32, %arg1: i32) -> (i32, i32, i32, i32) {
    %c0_i32 = arith.constant 0 : i32
    %c0_i32_0 = arith.constant 0 : i32
    %c0_i32_1 = arith.constant 0 : i32
    %c0_i32_2 = arith.constant 0 : i32
    return %arg0, %c0_i32, %c0_i32_0, %c0_i32_1 : i32, i32, i32, i32
  }
  func.func @transform_2(%arg0: i32, %arg1: i32) -> (i32, i32, i32, i32) {
    %c0_i32 = arith.constant 0 : i32
    %c0_i32_0 = arith.constant 0 : i32
    %c0_i32_1 = arith.constant 0 : i32
    %c0_i32_2 = arith.constant 0 : i32
    return %arg0, %c0_i32, %c0_i32_0, %c0_i32_1 : i32, i32, i32, i32
  }
  func.func @transform_3(%arg0: i32, %arg1: i32) -> (i32, i32, i32) {
    %c0_i32 = arith.constant 0 : i32
    %c0_i32_0 = arith.constant 0 : i32
    return %arg0, %arg1, %c0_i32 : i32, i32, i32
  }
  func.func @transform_4(%arg0: i32, %arg1: i32) -> (i32, i32, i32) {
    %c0_i32 = arith.constant 0 : i32
    %c0_i32_0 = arith.constant 0 : i32
    %c0_i32_1 = arith.constant 0 : i32
    return %arg0, %c0_i32, %c0_i32_0 : i32, i32, i32
  }
  func.func @transform_5(%arg0: i32, %arg1: i32) -> (i32, i32, i32) {
    %c0_i32 = arith.constant 0 : i32
    %c0_i32_0 = arith.constant 0 : i32
    %c0_i32_1 = arith.constant 0 : i32
    return %arg0, %c0_i32, %c0_i32_0 : i32, i32, i32
  }
  func.func @transform_6(%arg0: i32, %arg1: i32) -> (i32, i32, i32, i32) {
    %c0_i32 = arith.constant 0 : i32
    %c0_i32_0 = arith.constant 0 : i32
    %c0_i32_1 = arith.constant 0 : i32
    return %arg0, %c0_i32, %arg1, %c0_i32_0 : i32, i32, i32, i32
  }
  func.func @transform_7(%arg0: i32, %arg1: i32) -> (i32, i32, i32, i32) {
    %c0_i32 = arith.constant 0 : i32
    %c0_i32_0 = arith.constant 0 : i32
    %c0_i32_1 = arith.constant 0 : i32
    return %arg0, %c0_i32, %arg1, %c0_i32_0 : i32, i32, i32, i32
  }
}

</mosaic_0001>

<llo_original>
// kernel: tpu_custom_call.1
$region0: #{tpu_custom_call.1}
  #allocation0 [shape = 'u32[]', space=smem, size = 0x4, offset = 0x4, fixed_abs, tag = 'smem constant byte address 0x4 - core index']
  #allocation1 [shape = 'u32[144,128]{1,0:T(1,128)}', space=vmem, size = 0x12000, scoped, tag = 'internal scratch']
  %s0 = inlined_call_operand.hbm [shape: f32[2,2,16,32], index: 0, kind: input, shape index: {}]
  %s1 = inlined_call_operand.hbm [shape: f32[2,2,16,32], index: 1, kind: input, shape index: {}]
  %s2 = inlined_call_operand.hbm [shape: f32[2,2,16,32], index: 2, kind: input, shape index: {}]
  %s3 = inlined_call_operand.vmem [shape: f32[2,16,1], index: 3, kind: input, shape index: {}]
  %s4 = inlined_call_operand.vmem [shape: f32[2,1,16], index: 4, kind: input, shape index: {}]
  %s5 = inlined_call_operand.vmem [shape: f32[2,1,16], index: 5, kind: input, shape index: {}]
  %s6 = inlined_call_operand.hbm [shape: f32[2,2,16,32], index: 6, kind: output, shape index: {0}]
  %s7 = inlined_call_operand.hbm [shape: f32[2,2,16,16], index: 7, kind: output, shape index: {1}]
  %8 = xla_tuple %s6, %s7
  %s9 = sld [smem:[#allocation0]]
  $region77: #{tpu_custom_call.1} parent=0
    _
  %s11 = ssub.s32 1, %s9
  %s12 = scalar_select 0, %s11, %s9
  $region1: #{tpu_custom_call.1} parent=0
    #allocation2 [shape = 'u8[32768]{0}', space=vmem, size = 0x8000, scoped, tag = 'input window, operand 0']
    #allocation3 [shape = 's32[2]{0}', space=sflag, size = 0x8, scoped, tag = 'scoped memory for tpu_custom_call.1']
    #allocation4 [shape = 's32[2]{0}', space=sflag, size = 0x8, scoped, tag = 'scoped memory for tpu_custom_call.1']
    #allocation5 [shape = 'u8[32768]{0}', space=vmem, size = 0x8000, scoped, tag = 'input window, operand 1']
    #allocation6 [shape = 's32[2]{0}', space=sflag, size = 0x8, scoped, tag = 'scoped memory for tpu_custom_call.1']
    #allocation7 [shape = 'u8[32768]{0}', space=vmem, size = 0x8000, scoped, tag = 'input window, operand 2']
    #allocation8 [shape = 'u8[32768]{0}', space=vmem, size = 0x8000, scoped, tag = 'output window, operand 0']
    #allocation9 [shape = 'u8[32768]{0}', space=vmem, size = 0x8000, scoped, tag = 'output window, operand 1']
    #allocation10 [shape = 's32[2]{0}', space=sflag, size = 0x8, scoped, tag = 'scoped memory for tpu_custom_call.1']
    %13 = vsyncpa [#allocation3], 0
    %s14 = scalar_lea.sflag [#allocation3], 1
    %15 = vsyncpa %s14, 0
    %16 = vsyncpa [#allocation6], 0
    %s17 = scalar_lea.sflag [#allocation6], 1
    %18 = vsyncpa %s17, 0
    %19 = vsyncpa [#allocation4], 0
    %s20 = scalar_lea.sflag [#allocation4], 1
    %21 = vsyncpa %s20, 0
    %22 = vsyncpa [#allocation10], 0
    %s23 = scalar_lea.sflag [#allocation10], 1
    %24 = vsyncpa %s23, 0
    loop: start=0, step=1, limit=4
    $region2: #{tpu_custom_call.1} parent=1 // loop_pre_header
      _
    $region3: #{tpu_custom_call.1} parent=1 // loop_header
      %s26 = sphi 0, %s30
      %p27 = scmp.ge.s32.totalorder %s26, 4
      %s33 = sphi 0, %s45
      %s34 = sphi 0, %s41
      %s35 = sphi 0, %s33
      %s36 = sphi 0, %s34
      %s37 = sphi 0, %s35
      %s38 = sphi 0, %s36
      %s50 = sphi 0, %s52
      %s53 = sphi 0, %s50
      %s54 = sphi 0, %s53
      %s70 = sphi 0, %s54
      %s76 = sphi 0, %s78
      %s79 = sphi 0, %s76
      %s80 = sphi 0, %s79
      %s96 = sphi 0, %s80
      %s102 = sphi 0, %s104
      %s105 = sphi 0, %s102
      %s106 = sphi 0, %s105
      %s122 = sphi 0, %s106
      %s130 = sphi 0, %s132
      %s133 = sphi 0, %s130
      %s134 = sphi 0, %s133
      %s150 = sphi 0, %s134
      %s156 = sphi 0, %s158
      %s159 = sphi 0, %s156
      %s160 = sphi 0, %s159
      %s176 = sphi 0, %s160
      %s182 = sphi 0, %s184
      %s185 = sphi 0, %s182
      %s186 = sphi 0, %s185
      %s202 = sphi 0, %s186
      %s210 = sphi 0, %s212
      %s213 = sphi 0, %s210
      %s214 = sphi 0, %s213
      %s230 = sphi 0, %s214
      %s238 = sphi 0, %s240
      %s241 = sphi 0, %s238
      %s242 = sphi 0, %s241
      %s258 = sphi 0, %s242
    $region4: #{tpu_custom_call.1} parent=1 // loop_header_branch
      %29 = sbr.rel (%p27) target = $region8
    $region5: #{tpu_custom_call.1} parent=1 // loop_body
      %s31 = ssub.s32 %s26, 1
      %s32 = ssub.s32 %s26, 2
      %s39 = sadd.s32 1, %s34
      %p40 = scmp.ge.s32.totalorder %s39, 1
      %s41 = scalar_select %p40, 0, %s39
      %s42 = sadd.s32 1, %s33
      %s43 = scalar_select %p40, %s42, %s33
      %p44 = scmp.ge.s32.totalorder %s43, 2
      %s45 = scalar_select %p44, 0, %s43
      %s46 = ssub.s32 %s33, %s45
      %s47 = ssub.s32 %s34, %s41
      %s48 = sor.u32 %s46, %s47
      %p49 = scmp.eq.s32.totalorder %s48, 0
      %s51 = sadd.s32 %s50, 1
      %s52 = scalar_select %p49, %s50, %s51
      %p55 = pneg %p49
      %p56 = scmp.eq.s32.totalorder %s26, 1
      %p57 = por %p55, %p56
      %p58 = scmp.ne.s32.totalorder %s50, %s53
      %p59 = scmp.eq.s32.totalorder %s26, 0
      %p60 = por %p58, %p59
      %p61 = scmp.ne.s32.totalorder %s50, %s53
      %p62 = scmp.eq.s32.totalorder %s31, 1
      %p63 = por %p61, %p62
      %p64 = scmp.ne.s32.totalorder %s53, %s54
      %p65 = scmp.eq.s32.totalorder %s31, 0
      %p66 = por %p64, %p65
      %p67 = scmp.ne.s32.totalorder %s53, %s54
      %p68 = scmp.eq.s32.totalorder %s32, 1
      %p69 = por %p67, %p68
      %p71 = scmp.ne.s32.totalorder %s54, %s70
      %p72 = scmp.eq.s32.totalorder %s32, 0
      %p73 = por %p71, %p72
      %s74 = ssub.s32 %s33, %s45
      %p75 = scmp.eq.s32.totalorder %s74, 0
      %s77 = sadd.s32 %s76, 1
      %s78 = scalar_select %p75, %s76, %s77
      %p81 = pneg %p75
      %p82 = scmp.eq.s32.totalorder %s26, 1
      %p83 = por %p81, %p82
      %p84 = scmp.ne.s32.totalorder %s76, %s79
      %p85 = scmp.eq.s32.totalorder %s26, 0
      %p86 = por %p84, %p85
      %p87 = scmp.ne.s32.totalorder %s76, %s79
      %p88 = scmp.eq.s32.totalorder %s31, 1
      %p89 = por %p87, %p88
      %p90 = scmp.ne.s32.totalorder %s79, %s80
      %p91 = scmp.eq.s32.totalorder %s31, 0
      %p92 = por %p90, %p91
      %p93 = scmp.ne.s32.totalorder %s79, %s80
      %p94 = scmp.eq.s32.totalorder %s32, 1
      %p95 = por %p93, %p94
      %p97 = scmp.ne.s32.totalorder %s80, %s96
      %p98 = scmp.eq.s32.totalorder %s32, 0
      %p99 = por %p97, %p98
      %s100 = ssub.s32 %s33, %s45
      %p101 = scmp.eq.s32.totalorder %s100, 0
      %s103 = sadd.s32 %s102, 1
      %s104 = scalar_select %p101, %s102, %s103
      %p107 = pneg %p101
      %p108 = scmp.eq.s32.totalorder %s26, 1
      %p109 = por %p107, %p108
      %p110 = scmp.ne.s32.totalorder %s102, %s105
      %p111 = scmp.eq.s32.totalorder %s26, 0
      %p112 = por %p110, %p111
      %p113 = scmp.ne.s32.totalorder %s102, %s105
      %p114 = scmp.eq.s32.totalorder %s31, 1
      %p115 = por %p113, %p114
      %p116 = scmp.ne.s32.totalorder %s105, %s106
      %p117 = scmp.eq.s32.totalorder %s31, 0
      %p118 = por %p116, %p117
      %p119 = scmp.ne.s32.totalorder %s105, %s106
      %p120 = scmp.eq.s32.totalorder %s32, 1
      %p121 = por %p119, %p120
      %p123 = scmp.ne.s32.totalorder %s106, %s122
      %p124 = scmp.eq.s32.totalorder %s32, 0
      %p125 = por %p123, %p124
      %s126 = ssub.s32 %s33, %s45
      %s127 = ssub.s32 %s34, %s41
      %s128 = sor.u32 %s126, %s127
      %p129 = scmp.eq.s32.totalorder %s128, 0
      %s131 = sadd.s32 %s130, 1
      %s132 = scalar_select %p129, %s130, %s131
      %p135 = pneg %p129
      %p136 = scmp.eq.s32.totalorder %s26, 1
      %p137 = por %p135, %p136
      %p138 = scmp.ne.s32.totalorder %s130, %s133
      %p139 = scmp.eq.s32.totalorder %s26, 0
      %p140 = por %p138, %p139
      %p141 = scmp.ne.s32.totalorder %s130, %s133
      %p142 = scmp.eq.s32.totalorder %s31, 1
      %p143 = por %p141, %p142
      %p144 = scmp.ne.s32.totalorder %s133, %s134
      %p145 = scmp.eq.s32.totalorder %s31, 0
      %p146 = por %p144, %p145
      %p147 = scmp.ne.s32.totalorder %s133, %s134
      %p148 = scmp.eq.s32.totalorder %s32, 1
      %p149 = por %p147, %p148
      %p151 = scmp.ne.s32.totalorder %s134, %s150
      %p152 = scmp.eq.s32.totalorder %s32, 0
      %p153 = por %p151, %p152
      %s154 = ssub.s32 %s33, %s45
      %p155 = scmp.eq.s32.totalorder %s154, 0
      %s157 = sadd.s32 %s156, 1
      %s158 = scalar_select %p155, %s156, %s157
      %p161 = pneg %p155
      %p162 = scmp.eq.s32.totalorder %s26, 1
      %p163 = por %p161, %p162
      %p164 = scmp.ne.s32.totalorder %s156, %s159
      %p165 = scmp.eq.s32.totalorder %s26, 0
      %p166 = por %p164, %p165
      %p167 = scmp.ne.s32.totalorder %s156, %s159
      %p168 = scmp.eq.s32.totalorder %s31, 1
      %p169 = por %p167, %p168
      %p170 = scmp.ne.s32.totalorder %s159, %s160
      %p171 = scmp.eq.s32.totalorder %s31, 0
      %p172 = por %p170, %p171
      %p173 = scmp.ne.s32.totalorder %s159, %s160
      %p174 = scmp.eq.s32.totalorder %s32, 1
      %p175 = por %p173, %p174
      %p177 = scmp.ne.s32.totalorder %s160, %s176
      %p178 = scmp.eq.s32.totalorder %s32, 0
      %p179 = por %p177, %p178
      %s180 = ssub.s32 %s33, %s45
      %p181 = scmp.eq.s32.totalorder %s180, 0
      %s183 = sadd.s32 %s182, 1
      %s184 = scalar_select %p181, %s182, %s183
      %p187 = pneg %p181
      %p188 = scmp.eq.s32.totalorder %s26, 1
      %p189 = por %p187, %p188
      %p190 = scmp.ne.s32.totalorder %s182, %s185
      %p191 = scmp.eq.s32.totalorder %s26, 0
      %p192 = por %p190, %p191
      %p193 = scmp.ne.s32.totalorder %s182, %s185
      %p194 = scmp.eq.s32.totalorder %s31, 1
      %p195 = por %p193, %p194
      %p196 = scmp.ne.s32.totalorder %s185, %s186
      %p197 = scmp.eq.s32.totalorder %s31, 0
      %p198 = por %p196, %p197
      %p199 = scmp.ne.s32.totalorder %s185, %s186
      %p200 = scmp.eq.s32.totalorder %s32, 1
      %p201 = por %p199, %p200
      %p203 = scmp.ne.s32.totalorder %s186, %s202
      %p204 = scmp.eq.s32.totalorder %s32, 0
      %p205 = por %p203, %p204
      %s206 = ssub.s32 %s33, %s45
      %s207 = ssub.s32 %s34, %s41
      %s208 = sor.u32 %s206, %s207
      %p209 = scmp.eq.s32.totalorder %s208, 0
      %s211 = sadd.s32 %s210, 1
      %s212 = scalar_select %p209, %s210, %s211
      %p215 = pneg %p209
      %p216 = scmp.eq.s32.totalorder %s26, 1
      %p217 = por %p215, %p216
      %p218 = scmp.ne.s32.totalorder %s210, %s213
      %p219 = scmp.eq.s32.totalorder %s26, 0
      %p220 = por %p218, %p219
      %p221 = scmp.ne.s32.totalorder %s210, %s213
      %p222 = scmp.eq.s32.totalorder %s31, 1
      %p223 = por %p221, %p222
      %p224 = scmp.ne.s32.totalorder %s213, %s214
      %p225 = scmp.eq.s32.totalorder %s31, 0
      %p226 = por %p224, %p225
      %p227 = scmp.ne.s32.totalorder %s213, %s214
      %p228 = scmp.eq.s32.totalorder %s32, 1
      %p229 = por %p227, %p228
      %p231 = scmp.ne.s32.totalorder %s214, %s230
      %p232 = scmp.eq.s32.totalorder %s32, 0
      %p233 = por %p231, %p232
      %s234 = ssub.s32 %s33, %s45
      %s235 = ssub.s32 %s34, %s41
      %s236 = sor.u32 %s234, %s235
      %p237 = scmp.eq.s32.totalorder %s236, 0
      %s239 = sadd.s32 %s238, 1
      %s240 = scalar_select %p237, %s238, %s239
      %p243 = pneg %p237
      %p244 = scmp.eq.s32.totalorder %s26, 1
      %p245 = por %p243, %p244
      %p246 = scmp.ne.s32.totalorder %s238, %s241
      %p247 = scmp.eq.s32.totalorder %s26, 0
      %p248 = por %p246, %p247
      %p249 = scmp.ne.s32.totalorder %s238, %s241
      %p250 = scmp.eq.s32.totalorder %s31, 1
      %p251 = por %p249, %p250
      %p252 = scmp.ne.s32.totalorder %s241, %s242
      %p253 = scmp.eq.s32.totalorder %s31, 0
      %p254 = por %p252, %p253
      %p255 = scmp.ne.s32.totalorder %s241, %s242
      %p256 = scmp.eq.s32.totalorder %s32, 1
      %p257 = por %p255, %p256
      %p259 = scmp.ne.s32.totalorder %s242, %s258
      %p260 = scmp.eq.s32.totalorder %s32, 0
      %p261 = por %p259, %p260
      %p262 = scmp.le.s32.totalorder 1, %s26
      %p263 = scmp.lt.s32.totalorder %s26, 3
      %p264 = pnand %p262, %p263
      %p265 = pneg %p264
      // Predicated region
      $region9: #{tpu_custom_call.1} parent=5 // pred_check
        _
      $region10: #{tpu_custom_call.1} parent=5 // pred_check_branch
        %267 = sbr.rel (%p264) target = $region12
      $region11: #{tpu_custom_call.1} parent=5 // pred_region
        %s268 = ssub.s32 %s26, 1
      $region12: #{tpu_custom_call.1} parent=5 // pred_fallthru
        _
      %p269 = scmp.lt.s32.totalorder %s26, 2
      // Predicated region
      $region13: #{tpu_custom_call.1} parent=5 // pred_check
        %p270 = pneg %p269
      $region14: #{tpu_custom_call.1} parent=5 // pred_check_branch
        %272 = sbr.rel (%p270) target = $region16
      $region15: #{tpu_custom_call.1} parent=5 // pred_region
        // Predicated region
        $region17: #{tpu_custom_call.1} parent=15 // pred_check
          %p273 = pneg %p60
        $region18: #{tpu_custom_call.1} parent=15 // pred_check_branch
          %275 = sbr.rel (%p273) target = $region20
        $region19: #{tpu_custom_call.1} parent=15 // pred_region
          %s276 = sand.u32 %s50, 1
          %s277 = scalar_lea.sflag [#allocation3], %s276
          %s278 = sand.u32 %s50, 1
          %s279 = smul.addr %s278, 32
          %s280 = scalar_lea.vmem [#allocation2], %s279
          %s281 = smul.u32 2, %s34
          %s283 = ssub.s32 512, 512
          %284 = vsyncadd %s277, %s283
          %s285 = smul.addr %s33, 4
          %s286 = sadd.s32 %s281, %s285
          %s287 = smul.addr %s286, 128
          %s288 = scalar_lea.hbm %s0, %s287
          %s289 = sshll.u32 %s280, 4
          %s290 = int_to_ptr.vmem [resolvable:$true] %s289
          %295 = dma.hbm_to_vmem [thread:$0]  %s288, 512, %s290, %s277, 128, 128, 8
        $region20: #{tpu_custom_call.1} parent=15 // pred_fallthru
          _
        // Predicated region
        $region21: #{tpu_custom_call.1} parent=15 // pred_check
          %p296 = pneg %p86
        $region22: #{tpu_custom_call.1} parent=15 // pred_check_branch
          %298 = sbr.rel (%p296) target = $region24
        $region23: #{tpu_custom_call.1} parent=15 // pred_region
          %s299 = sand.u32 %s26, 1
          %s300 = scalar_lea.sflag [#allocation6], %s299
          %s301 = sand.u32 %s76, 1
          %s302 = smul.addr %s301, 32
          %s303 = scalar_lea.vmem [#allocation5], %s302
          %s305 = ssub.s32 512, 512
          %306 = vsyncadd %s300, %s305
          %s307 = smul.addr %s33, 4
          %s308 = smul.addr %s307, 128
          %s309 = scalar_lea.hbm %s1, %s308
          %s310 = sshll.u32 %s303, 4
          %s311 = int_to_ptr.vmem [resolvable:$true] %s310
          %316 = dma.hbm_to_vmem [thread:$0]  %s309, 512, %s311, %s300, 128, 128, 8
        $region24: #{tpu_custom_call.1} parent=15 // pred_fallthru
          _
        // Predicated region
        $region25: #{tpu_custom_call.1} parent=15 // pred_check
          %p317 = pneg %p112
        $region26: #{tpu_custom_call.1} parent=15 // pred_check_branch
          %319 = sbr.rel (%p317) target = $region28
        $region27: #{tpu_custom_call.1} parent=15 // pred_region
          %s320 = sand.u32 %s26, 1
          %s321 = scalar_lea.sflag [#allocation6], %s320
          %s322 = sand.u32 %s102, 1
          %s323 = smul.addr %s322, 32
          %s324 = scalar_lea.vmem [#allocation7], %s323
          %s326 = ssub.s32 512, 512
          %327 = vsyncadd %s321, %s326
          %s328 = smul.addr %s33, 4
          %s329 = smul.addr %s328, 128
          %s330 = scalar_lea.hbm %s2, %s329
          %s331 = sshll.u32 %s324, 4
          %s332 = int_to_ptr.vmem [resolvable:$true] %s331
          %337 = dma.hbm_to_vmem [thread:$0]  %s330, 512, %s332, %s321, 128, 128, 8
        $region28: #{tpu_custom_call.1} parent=15 // pred_fallthru
          _
        // Predicated region
        $region29: #{tpu_custom_call.1} parent=15 // pred_check
          %p338 = pneg %p140
        $region30: #{tpu_custom_call.1} parent=15 // pred_check_branch
          %340 = sbr.rel (%p338) target = $region32
        $region31: #{tpu_custom_call.1} parent=15 // pred_region
          %s341 = smul.u32 2, %s34
          %p342 = scmp.lt.s32.totalorder %s33, 1
          %s343 = scalar_select %p342, %s33, 1
          %p344 = scmp.lt.s32.totalorder %s341, 1
          %s345 = scalar_select %p344, %s341, 1
          %s346 = smul.addr %s343, 2
          %s347 = sadd.s32 %s345, %s346
          %s348 = smul.addr %s347, 8
          %s349 = scalar_lea.vmem %s3, %s348
          %s350 = smul.u32 2, %s34
        $region32: #{tpu_custom_call.1} parent=15 // pred_fallthru
          _
        // Predicated region
        $region33: #{tpu_custom_call.1} parent=15 // pred_check
          %p351 = pneg %p166
        $region34: #{tpu_custom_call.1} parent=15 // pred_check_branch
          %353 = sbr.rel (%p351) target = $region36
        $region35: #{tpu_custom_call.1} parent=15 // pred_region
          %p354 = scmp.lt.s32.totalorder %s33, 1
          %s355 = scalar_select %p354, %s33, 1
          %s356 = scalar_lea.vmem %s4, %s355
        $region36: #{tpu_custom_call.1} parent=15 // pred_fallthru
          _
        // Predicated region
        $region37: #{tpu_custom_call.1} parent=15 // pred_check
          %p357 = pneg %p192
        $region38: #{tpu_custom_call.1} parent=15 // pred_check_branch
          %359 = sbr.rel (%p357) target = $region40
        $region39: #{tpu_custom_call.1} parent=15 // pred_region
          %p360 = scmp.lt.s32.totalorder %s33, 1
          %s361 = scalar_select %p360, %s33, 1
          %s362 = scalar_lea.vmem %s5, %s361
        $region40: #{tpu_custom_call.1} parent=15 // pred_fallthru
          _
      $region16: #{tpu_custom_call.1} parent=5 // pred_fallthru
        _
      %p363 = scmp.le.s32.totalorder 1, %s26
      %p364 = scmp.lt.s32.totalorder %s26, 3
      %p365 = pnand %p363, %p364
      %p366 = pneg %p365
      // Predicated region
      $region41: #{tpu_custom_call.1} parent=5 // pred_check
        _
      $region42: #{tpu_custom_call.1} parent=5 // pred_check_branch
        %368 = sbr.rel (%p365) target = $region44
      $region43: #{tpu_custom_call.1} parent=5 // pred_region
        %s369 = ssub.s32 %s26, 1
        %s370 = sand.u32 %s53, 1
        %s371 = scalar_lea.sflag [#allocation3], %s370
        %s372 = sand.u32 %s53, 1
        %s373 = smul.addr %s372, 32
        %s374 = scalar_lea.vmem [#allocation2], %s373
        // Predicated region
        $region45: #{tpu_custom_call.1} parent=43 // pred_check
          %p375 = pneg %p66
        $region46: #{tpu_custom_call.1} parent=43 // pred_check_branch
          %377 = sbr.rel (%p375) target = $region48
        $region47: #{tpu_custom_call.1} parent=43 // pred_region
          %378 = dma.done %s371, 512
        $region48: #{tpu_custom_call.1} parent=43 // pred_fallthru
          _
        %s379 = sand.u32 %s31, 1
        %s380 = scalar_lea.sflag [#allocation6], %s379
        %s381 = sand.u32 %s79, 1
        %s382 = smul.addr %s381, 32
        %s383 = scalar_lea.vmem [#allocation5], %s382
        // Predicated region
        $region49: #{tpu_custom_call.1} parent=43 // pred_check
          %p384 = pneg %p92
        $region50: #{tpu_custom_call.1} parent=43 // pred_check_branch
          %386 = sbr.rel (%p384) target = $region52
        $region51: #{tpu_custom_call.1} parent=43 // pred_region
          %387 = dma.done %s380, 512
        $region52: #{tpu_custom_call.1} parent=43 // pred_fallthru
          _
        %s388 = sand.u32 %s31, 1
        %s389 = scalar_lea.sflag [#allocation6], %s388
        %s390 = sand.u32 %s105, 1
        %s391 = smul.addr %s390, 32
        %s392 = scalar_lea.vmem [#allocation7], %s391
        // Predicated region
        $region53: #{tpu_custom_call.1} parent=43 // pred_check
          %p393 = pneg %p118
        $region54: #{tpu_custom_call.1} parent=43 // pred_check_branch
          %395 = sbr.rel (%p393) target = $region56
        $region55: #{tpu_custom_call.1} parent=43 // pred_region
          %396 = dma.done %s389, 512
        $region56: #{tpu_custom_call.1} parent=43 // pred_fallthru
          _
        %s397 = sand.u32 %s53, 1
        %s398 = scalar_lea.sflag [#allocation3], %s397
        %s399 = sand.u32 %s53, 1
        %s400 = smul.addr %s399, 32
        %s401 = scalar_lea.vmem [#allocation2], %s400
        %p402 = pneg %p66
        %p403 = pneg %p63
        %s404 = sand.u32 %s31, 1
        %s405 = scalar_lea.sflag [#allocation6], %s404
        %s406 = sand.u32 %s79, 1
        %s407 = smul.addr %s406, 32
        %s408 = scalar_lea.vmem [#allocation5], %s407
        %p409 = pneg %p92
        %p410 = pneg %p89
        %s411 = sand.u32 %s31, 1
        %s412 = scalar_lea.sflag [#allocation6], %s411
        %s413 = sand.u32 %s105, 1
        %s414 = smul.addr %s413, 32
        %s415 = scalar_lea.vmem [#allocation7], %s414
        %p416 = pneg %p118
        %p417 = pneg %p115
        %s418 = smul.u32 2, %s36
        %p419 = scmp.lt.s32.totalorder %s35, 1
        %s420 = scalar_select %p419, %s35, 1
        %p421 = scmp.lt.s32.totalorder %s418, 1
        %s422 = scalar_select %p421, %s418, 1
        %s423 = smul.addr %s420, 2
        %s424 = sadd.s32 %s422, %s423
        %s425 = smul.addr %s424, 8
        %s426 = scalar_lea.vmem %s3, %s425
        %p427 = pneg %p146
        %p428 = pneg %p143
        %p429 = scmp.lt.s32.totalorder %s35, 1
        %s430 = scalar_select %p429, %s35, 1
        %s431 = scalar_lea.vmem %s4, %s430
        %p432 = pneg %p172
        %p433 = pneg %p169
        %p434 = scmp.lt.s32.totalorder %s35, 1
        %s435 = scalar_select %p434, %s35, 1
        %s436 = scalar_lea.vmem %s5, %s435
        %p437 = pneg %p198
        %p438 = pneg %p195
        %p439 = pneg %p226
        %p440 = pneg %p223
        %s441 = sand.u32 %s213, 1
        %s442 = scalar_lea.sflag [#allocation4], %s441
        %s443 = sand.u32 %s213, 1
        %s444 = smul.addr %s443, 32
        %s445 = scalar_lea.vmem [#allocation8], %s444
        %p446 = pneg %p254
        %p447 = pneg %p251
        %s448 = sand.u32 %s241, 1
        %s449 = scalar_lea.sflag [#allocation10], %s448
        %s450 = sand.u32 %s241, 1
        %s451 = smul.addr %s450, 32
        %s452 = scalar_lea.vmem [#allocation9], %s451
        %s453 = smul.u32 2, %s36
        %s454 = smul.u32 2, %s36
        %p455 = scmp.lt.s32.totalorder %s35, 1
        %s456 = scalar_select %p455, %s35, 1
        %p457 = scmp.lt.s32.totalorder %s454, 1
        %s458 = scalar_select %p457, %s454, 1
        %s459 = smul.addr %s456, 2
        %s460 = sadd.s32 %s458, %s459
        %s461 = smul.addr %s460, 8
        %s462 = scalar_lea.vmem %s3, %s461
        %s463 = smul.u32 2, %s36
        %p464 = scmp.lt.s32.totalorder %s35, 1
        %s465 = scalar_select %p464, %s35, 1
        %s466 = scalar_lea.vmem %s4, %s465
        %p467 = scmp.lt.s32.totalorder %s35, 1
        %s468 = scalar_select %p467, %s35, 1
        %s469 = scalar_lea.vmem %s5, %s468
        %s470 = smul.u32 2, %s36
        %s471 = smul.u32 2, %s36
        %v472 = vld [vmem:[%s374] sm:$0xff]
        %v473 = vld [vmem:[%s374 + $0x8] sm:$0xff]
        %v474 = vld [vmem:[%s374 + $0x10] sm:$0xff]
        %v475 = vld [vmem:[%s374 + $0x18] sm:$0xff]
        %v476 = vmul.f32 %v472, 0.17677669
        %v477 = vmul.f32 %v473, 0.17677669
        %v478 = vmul.f32 %v474, 0.17677669
        %v479 = vmul.f32 %v475, 0.17677669
        %v480 = vld [vmem:[%s383] sm:$0xff]
        %v481 = vld [vmem:[%s383 + $0x8] sm:$0xff]
        %v482 = vld [vmem:[%s383 + $0x10] sm:$0xff]
        %v483 = vld [vmem:[%s383 + $0x18] sm:$0xff]
        %v484 = vld [vmem:[%s392] sm:$0xff]
        %v485 = vld [vmem:[%s392 + $0x8] sm:$0xff]
        %v486 = vld [vmem:[%s392 + $0x10] sm:$0xff]
        %v487 = vld [vmem:[%s392 + $0x18] sm:$0xff]
        %v488 = vld [vmem:[%s462] sm:$0xff]
        %v489 = vld [vmem:[%s462 + $0x8] sm:$0xff]
        %v490 = vld [vmem:[%s466] sm:$0x1]
        %v491 = vld [vmem:[%s469] sm:$0x1]
        %vm492 = vcmask 261120
        %v494 = vsel %vm492, %v476, 0
        %v497 = vsel %vm492, %v477, 0
        %v500 = vsel %vm492, %v480, 0
        %v503 = vsel %vm492, %v481, 0
        %505 = vmatprep.subr.mxu0 0.0
        %506 = vmatpush1.xpose.msra.mxu0 %v500
        %507 = vmatprep.subr.mxu0 0.0
        %508 = vmatpush1.xpose.msra.mxu0 %v503
        %509 = vmatprep.subr.mxu0 0.0
        %510 = vmatpush1.xpose.msra.mxu0 0.0
        %511 = vmatprep.subr.mxu0 0.0
        %512 = vmatpush1.xpose.msra.mxu0 0.0
        %513 = vmatprep.subr.mxu0 0.0
        %514 = vmatpush1.xpose.msra.mxu0 0.0
        %515 = vmatprep.subr.mxu0 0.0
        %516 = vmatpush1.xpose.msra.mxu0 0.0
        %517 = vmatprep.subr.mxu0 0.0
        %518 = vmatpush1.xpose.msra.mxu0 0.0
        %519 = vmatprep.subr.mxu0 0.0
        %520 = vmatpush1.xpose.msra.mxu0 0.0
        %521 = vmatprep.subr.mxu0 0.0
        %522 = vmatpush1.xpose.msra.mxu0 0.0
        %523 = vmatprep.subr.mxu0 0.0
        %524 = vmatpush1.xpose.msra.mxu0 0.0
        %525 = vmatprep.subr.mxu0 0.0
        %526 = vmatpush1.xpose.msra.mxu0 0.0
        %527 = vmatprep.subr.mxu0 0.0
        %528 = vmatpush1.xpose.msra.mxu0 0.0
        %529 = vmatprep.subr.mxu0 0.0
        %530 = vmatpush1.xpose.msra.mxu0 0.0
        %531 = vmatprep.subr.mxu0 0.0
        %532 = vmatpush1.xpose.msra.mxu0 0.0
        %533 = vmatprep.subr.mxu0 0.0
        %534 = vmatpush1.xpose.msra.mxu0 0.0
        %535 = vmatprep.subr.mxu0 0.0
        %536 = vmatpush1.xpose.msra.mxu0 0.0
        %537 = vmatprep.subr.mxu0 0.0
        %538 = vmatpush1.xpose.msra.mxu0 0.0
        %539 = vmatprep.subr.mxu0 0.0
        %540 = vmatpush1.xpose.msra.mxu0 0.0
        %541 = vmatprep.subr.mxu0 0.0
        %542 = vmatpush1.xpose.msra.mxu0 0.0
        %543 = vmatprep.subr.mxu0 0.0
        %544 = vmatpush1.xpose.msra.mxu0 0.0
        %545 = vmatprep.subr.mxu0 0.0
        %546 = vmatpush1.xpose.msra.mxu0 0.0
        %547 = vmatprep.subr.mxu0 0.0
        %548 = vmatpush1.xpose.msra.mxu0 0.0
        %549 = vmatprep.subr.mxu0 0.0
        %550 = vmatpush1.xpose.msra.mxu0 0.0
        %551 = vmatprep.subr.mxu0 0.0
        %552 = vmatpush1.xpose.msra.mxu0 0.0
        %553 = vmatprep.subr.mxu0 0.0
        %554 = vmatpush1.xpose.msra.mxu0 0.0
        %555 = vmatprep.subr.mxu0 0.0
        %556 = vmatpush1.xpose.msra.mxu0 0.0
        %557 = vmatprep.subr.mxu0 0.0
        %558 = vmatpush1.xpose.msra.mxu0 0.0
        %559 = vmatprep.subr.mxu0 0.0
        %560 = vmatpush1.xpose.msra.mxu0 0.0
        %561 = vmatprep.subr.mxu0 0.0
        %562 = vmatpush1.xpose.msra.mxu0 0.0
        %563 = vmatprep.subr.mxu0 0.0
        %564 = vmatpush1.xpose.msra.mxu0 0.0
        %565 = vmatprep.subr.mxu0 0.0
        %566 = vmatpush1.xpose.msra.mxu0 0.0
        %567 = vmatprep.subr.mxu0 0.0
        %568 = vmatpush1.xpose.msra.mxu0 0.0
        %569 = vmatprep.mubr.f32.mxu0 0.0
        %570 = vmatmul.mubr.f32.gmra.mrb[0].mxu0 %v494
        %v571 = vpop.f32.mrb[0].mxu0
        %v572 = vadd.f32 0.0, %v571
        %v573 = vpop.f32.mrb[0].mxu0
        %574 = vmatprep.mubr.f32.mxu0 0.0
        %575 = vmatmul.mubr.f32.gmra.mrb[0].mxu0 %v497
        %v576 = vpop.f32.mrb[0].mxu0
        %v577 = vadd.f32 0.0, %v576
        %v578 = vpop.f32.mrb[0].mxu0
        %579 = vdwg.mxu0
        %v581 = vsel %vm492, %v478, 0
        %v584 = vsel %vm492, %v479, 0
        %v587 = vsel %vm492, %v482, 0
        %v590 = vsel %vm492, %v483, 0
        %592 = vmatprep.subr.mxu0 0.0
        %593 = vmatpush1.xpose.msra.mxu0 %v587
        %594 = vmatprep.subr.mxu0 0.0
        %595 = vmatpush1.xpose.msra.mxu0 %v590
        %596 = vmatprep.subr.mxu0 0.0
        %597 = vmatpush1.xpose.msra.mxu0 0.0
        %598 = vmatprep.subr.mxu0 0.0
        %599 = vmatpush1.xpose.msra.mxu0 0.0
        %600 = vmatprep.subr.mxu0 0.0
        %601 = vmatpush1.xpose.msra.mxu0 0.0
        %602 = vmatprep.subr.mxu0 0.0
        %603 = vmatpush1.xpose.msra.mxu0 0.0
        %604 = vmatprep.subr.mxu0 0.0
        %605 = vmatpush1.xpose.msra.mxu0 0.0
        %606 = vmatprep.subr.mxu0 0.0
        %607 = vmatpush1.xpose.msra.mxu0 0.0
        %608 = vmatprep.subr.mxu0 0.0
        %609 = vmatpush1.xpose.msra.mxu0 0.0
        %610 = vmatprep.subr.mxu0 0.0
        %611 = vmatpush1.xpose.msra.mxu0 0.0
        %612 = vmatprep.subr.mxu0 0.0
        %613 = vmatpush1.xpose.msra.mxu0 0.0
        %614 = vmatprep.subr.mxu0 0.0
        %615 = vmatpush1.xpose.msra.mxu0 0.0
        %616 = vmatprep.subr.mxu0 0.0
        %617 = vmatpush1.xpose.msra.mxu0 0.0
        %618 = vmatprep.subr.mxu0 0.0
        %619 = vmatpush1.xpose.msra.mxu0 0.0
        %620 = vmatprep.subr.mxu0 0.0
        %621 = vmatpush1.xpose.msra.mxu0 0.0
        %622 = vmatprep.subr.mxu0 0.0
        %623 = vmatpush1.xpose.msra.mxu0 0.0
        %624 = vmatprep.subr.mxu0 0.0
        %625 = vmatpush1.xpose.msra.mxu0 0.0
        %626 = vmatprep.subr.mxu0 0.0
        %627 = vmatpush1.xpose.msra.mxu0 0.0
        %628 = vmatprep.subr.mxu0 0.0
        %629 = vmatpush1.xpose.msra.mxu0 0.0
        %630 = vmatprep.subr.mxu0 0.0
        %631 = vmatpush1.xpose.msra.mxu0 0.0
        %632 = vmatprep.subr.mxu0 0.0
        %633 = vmatpush1.xpose.msra.mxu0 0.0
        %634 = vmatprep.subr.mxu0 0.0
        %635 = vmatpush1.xpose.msra.mxu0 0.0
        %636 = vmatprep.subr.mxu0 0.0
        %637 = vmatpush1.xpose.msra.mxu0 0.0
        %638 = vmatprep.subr.mxu0 0.0
        %639 = vmatpush1.xpose.msra.mxu0 0.0
        %640 = vmatprep.subr.mxu0 0.0
        %641 = vmatpush1.xpose.msra.mxu0 0.0
        %642 = vmatprep.subr.mxu0 0.0
        %643 = vmatpush1.xpose.msra.mxu0 0.0
        %644 = vmatprep.subr.mxu0 0.0
        %645 = vmatpush1.xpose.msra.mxu0 0.0
        %646 = vmatprep.subr.mxu0 0.0
        %647 = vmatpush1.xpose.msra.mxu0 0.0
        %648 = vmatprep.subr.mxu0 0.0
        %649 = vmatpush1.xpose.msra.mxu0 0.0
        %650 = vmatprep.subr.mxu0 0.0
        %651 = vmatpush1.xpose.msra.mxu0 0.0
        %652 = vmatprep.subr.mxu0 0.0
        %653 = vmatpush1.xpose.msra.mxu0 0.0
        %654 = vmatprep.subr.mxu0 0.0
        %655 = vmatpush1.xpose.msra.mxu0 0.0
        %656 = vmatprep.mubr.f32.mxu0 0.0
        %657 = vmatmul.mubr.f32.gmra.mrb[0].mxu0 %v581
        %v658 = vpop.f32.mrb[0].mxu0
        %v659 = vadd.f32 0.0, %v658
        %v660 = vpop.f32.mrb[0].mxu0
        %661 = vmatprep.mubr.f32.mxu0 0.0
        %662 = vmatmul.mubr.f32.gmra.mrb[0].mxu0 %v584
        %v663 = vpop.f32.mrb[0].mxu0
        %v664 = vadd.f32 0.0, %v663
        %v665 = vpop.f32.mrb[0].mxu0
        %666 = vdwg.mxu0
        %vm667 = vcmp.gt.f32.partialorder %v488, 0.5
        %vm668 = vcmp.gt.f32.partialorder %v489, 0.5
        %v669 = vsel %vm667, 1, 0
        %v670 = vsel %vm668, 1, 0
        %671 = vset.pattern.permute.xlu0 0
        %672 = vperm.xlu0 %671, %v669
        %v673 = vpop.permute.xlu0 %672
        %674 = vset.pattern.permute.xlu0 0
        %675 = vperm.xlu0 %674, %v670
        %v676 = vpop.permute.xlu0 %675
        %vm677 = vcmp.eq.s32.totalorder %v673, 1
        %vm678 = vcmp.eq.s32.totalorder %v676, 1
        %v679 = vsel %vm677, %v572, -10000.0
        %v680 = vsel %vm678, %v577, -10000.0
        %v681 = vsel %vm677, %v659, -10000.0
        %v682 = vsel %vm678, %v664, -10000.0
        %vm683 = vcmp.gt.f32.partialorder %v490, 0.5
        %v684 = vsel %vm683, 1, 0
        %v685 = vlaneseq
        %v686 = vshrl.u32 %v685, 7
        %v687 = vsub.s32 0, %v686
        %v688 = vrot.slane %v684, %v687
        %vm689 = vcmp.eq.s32.totalorder %v688, 1
        %v690 = vsel %vm689, %v679, -10000.0
        %v691 = vsel %vm689, %v680, -10000.0
        %v692 = vsel %vm689, %v681, -10000.0
        %v693 = vsel %vm689, %v682, -10000.0
        %vm694 = vcmask 130048
        %v695 = vsel %vm694, %v690, -inf
        %696 = vmax.xlane.f32.xlu0 %v695
        %v697 = vpop.xlane.xlu0 %696
        %v698 = vsel %vm694, %v691, -inf
        %699 = vmax.xlane.f32.xlu0 %v698
        %v700 = vpop.xlane.xlu0 %699
        %v701 = vsel %vm694, %v692, -inf
        %702 = vmax.xlane.f32.xlu0 %v701
        %v703 = vpop.xlane.xlu0 %702
        %v704 = vsel %vm694, %v693, -inf
        %705 = vmax.xlane.f32.xlu0 %v704
        %v706 = vpop.xlane.xlu0 %705
        %v707 = vsub.f32 %v690, %v697
        %v708 = vsub.f32 %v691, %v700
        %v709 = vsub.f32 %v692, %v703
        %v710 = vsub.f32 %v693, %v706
        %v711 = vmul.f32 %v707, 1.442695
        %v712 = vpow.pop %v711
        %v713 = vmul.f32 %v708, 1.442695
        %v714 = vpow.pop %v713
        %v715 = vmul.f32 %v709, 1.442695
        %v716 = vpow.pop %v715
        %v717 = vmul.f32 %v710, 1.442695
        %v718 = vpow.pop %v717
        %v719 = vsel %vm694, %v712, 0.0
        %720 = vadd.xlane.f32.xlu0 %v719
        %v721 = vpop.xlane.xlu0 %720
        %v722 = vsel %vm694, %v714, 0.0
        %723 = vadd.xlane.f32.xlu0 %v722
        %v724 = vpop.xlane.xlu0 %723
        %v725 = vsel %vm694, %v716, 0.0
        %726 = vadd.xlane.f32.xlu0 %v725
        %v727 = vpop.xlane.xlu0 %726
        %v728 = vsel %vm694, %v718, 0.0
        %729 = vadd.xlane.f32.xlu0 %v728
        %v730 = vpop.xlane.xlu0 %729
        %v731 = vrcp.pop %v721
        %v732 = vrcp.pop %v724
        %v733 = vrcp.pop %v727
        %v734 = vrcp.pop %v730
        %v735 = vmul.f32 %v712, %v731
        %v736 = vmul.f32 %v714, %v732
        %v737 = vmul.f32 %v716, %v733
        %v738 = vmul.f32 %v718, %v734
        %v740 = vlaneseq
        %v741 = vshrl.u32 %v740, 7
        %v742 = vsub.s32 0, %v741
        %v743 = vrot.slane %v491, %v742
        %v745 = vmul.f32 %v735, %v743
        %v746 = vmul.f32 %v736, %v743
        %v747 = vmul.f32 %v737, %v743
        %v748 = vmul.f32 %v738, %v743
        %v750 = vsel %vm694, %v745, 0
        %v753 = vsel %vm694, %v746, 0
        %755 = vmatprep.subr.mxu0 0.0
        %756 = vmatpush1.msra.mxu0 %v484
        %757 = vmatprep.subr.mxu0 0.0
        %758 = vmatpush1.msra.mxu0 %v485
        %759 = vmatprep.subr.mxu0 0.0
        %760 = vmatpush1.msra.mxu0 0.0
        %761 = vmatprep.subr.mxu0 0.0
        %762 = vmatpush1.msra.mxu0 0.0
        %763 = vmatprep.subr.mxu0 0.0
        %764 = vmatpush1.msra.mxu0 0.0
        %765 = vmatprep.subr.mxu0 0.0
        %766 = vmatpush1.msra.mxu0 0.0
        %767 = vmatprep.subr.mxu0 0.0
        %768 = vmatpush1.msra.mxu0 0.0
        %769 = vmatprep.subr.mxu0 0.0
        %770 = vmatpush1.msra.mxu0 0.0
        %771 = vmatprep.subr.mxu0 0.0
        %772 = vmatpush1.msra.mxu0 0.0
        %773 = vmatprep.subr.mxu0 0.0
        %774 = vmatpush1.msra.mxu0 0.0
        %775 = vmatprep.subr.mxu0 0.0
        %776 = vmatpush1.msra.mxu0 0.0
        %777 = vmatprep.subr.mxu0 0.0
        %778 = vmatpush1.msra.mxu0 0.0
        %779 = vmatprep.subr.mxu0 0.0
        %780 = vmatpush1.msra.mxu0 0.0
        %781 = vmatprep.subr.mxu0 0.0
        %782 = vmatpush1.msra.mxu0 0.0
        %783 = vmatprep.subr.mxu0 0.0
        %784 = vmatpush1.msra.mxu0 0.0
        %785 = vmatprep.subr.mxu0 0.0
        %786 = vmatpush1.msra.mxu0 0.0
        %787 = vmatprep.subr.mxu0 0.0
        %788 = vmatpush1.msra.mxu0 0.0
        %789 = vmatprep.subr.mxu0 0.0
        %790 = vmatpush1.msra.mxu0 0.0
        %791 = vmatprep.subr.mxu0 0.0
        %792 = vmatpush1.msra.mxu0 0.0
        %793 = vmatprep.subr.mxu0 0.0
        %794 = vmatpush1.msra.mxu0 0.0
        %795 = vmatprep.subr.mxu0 0.0
        %796 = vmatpush1.msra.mxu0 0.0
        %797 = vmatprep.subr.mxu0 0.0
        %798 = vmatpush1.msra.mxu0 0.0
        %799 = vmatprep.subr.mxu0 0.0
        %800 = vmatpush1.msra.mxu0 0.0
        %801 = vmatprep.subr.mxu0 0.0
        %802 = vmatpush1.msra.mxu0 0.0
        %803 = vmatprep.subr.mxu0 0.0
        %804 = vmatpush1.msra.mxu0 0.0
        %805 = vmatprep.subr.mxu0 0.0
        %806 = vmatpush1.msra.mxu0 0.0
        %807 = vmatprep.subr.mxu0 0.0
        %808 = vmatpush1.msra.mxu0 0.0
        %809 = vmatprep.subr.mxu0 0.0
        %810 = vmatpush1.msra.mxu0 0.0
        %811 = vmatprep.subr.mxu0 0.0
        %812 = vmatpush1.msra.mxu0 0.0
        %813 = vmatprep.subr.mxu0 0.0
        %814 = vmatpush1.msra.mxu0 0.0
        %815 = vmatprep.subr.mxu0 0.0
        %816 = vmatpush1.msra.mxu0 0.0
        %817 = vmatprep.subr.mxu0 0.0
        %818 = vmatpush1.msra.mxu0 0.0
        %819 = vmatprep.mubr.f32.mxu0 0.0
        %820 = vmatmul.mubr.f32.gmra.mrb[0].mxu0 %v750
        %v821 = vpop.f32.mrb[0].mxu0
        %v822 = vadd.f32 0.0, %v821
        %v823 = vpop.f32.mrb[0].mxu0
        %824 = vmatprep.mubr.f32.mxu0 0.0
        %825 = vmatmul.mubr.f32.gmra.mrb[0].mxu0 %v753
        %v826 = vpop.f32.mrb[0].mxu0
        %v827 = vadd.f32 0.0, %v826
        %v828 = vpop.f32.mrb[0].mxu0
        %829 = vdwg.mxu0
        %v831 = vsel %vm694, %v747, 0
        %v834 = vsel %vm694, %v748, 0
        %836 = vmatprep.subr.mxu0 0.0
        %837 = vmatpush1.msra.mxu0 %v486
        %838 = vmatprep.subr.mxu0 0.0
        %839 = vmatpush1.msra.mxu0 %v487
        %840 = vmatprep.subr.mxu0 0.0
        %841 = vmatpush1.msra.mxu0 0.0
        %842 = vmatprep.subr.mxu0 0.0
        %843 = vmatpush1.msra.mxu0 0.0
        %844 = vmatprep.subr.mxu0 0.0
        %845 = vmatpush1.msra.mxu0 0.0
        %846 = vmatprep.subr.mxu0 0.0
        %847 = vmatpush1.msra.mxu0 0.0
        %848 = vmatprep.subr.mxu0 0.0
        %849 = vmatpush1.msra.mxu0 0.0
        %850 = vmatprep.subr.mxu0 0.0
        %851 = vmatpush1.msra.mxu0 0.0
        %852 = vmatprep.subr.mxu0 0.0
        %853 = vmatpush1.msra.mxu0 0.0
        %854 = vmatprep.subr.mxu0 0.0
        %855 = vmatpush1.msra.mxu0 0.0
        %856 = vmatprep.subr.mxu0 0.0
        %857 = vmatpush1.msra.mxu0 0.0
        %858 = vmatprep.subr.mxu0 0.0
        %859 = vmatpush1.msra.mxu0 0.0
        %860 = vmatprep.subr.mxu0 0.0
        %861 = vmatpush1.msra.mxu0 0.0
        %862 = vmatprep.subr.mxu0 0.0
        %863 = vmatpush1.msra.mxu0 0.0
        %864 = vmatprep.subr.mxu0 0.0
        %865 = vmatpush1.msra.mxu0 0.0
        %866 = vmatprep.subr.mxu0 0.0
        %867 = vmatpush1.msra.mxu0 0.0
        %868 = vmatprep.subr.mxu0 0.0
        %869 = vmatpush1.msra.mxu0 0.0
        %870 = vmatprep.subr.mxu0 0.0
        %871 = vmatpush1.msra.mxu0 0.0
        %872 = vmatprep.subr.mxu0 0.0
        %873 = vmatpush1.msra.mxu0 0.0
        %874 = vmatprep.subr.mxu0 0.0
        %875 = vmatpush1.msra.mxu0 0.0
        %876 = vmatprep.subr.mxu0 0.0
        %877 = vmatpush1.msra.mxu0 0.0
        %878 = vmatprep.subr.mxu0 0.0
        %879 = vmatpush1.msra.mxu0 0.0
        %880 = vmatprep.subr.mxu0 0.0
        %881 = vmatpush1.msra.mxu0 0.0
        %882 = vmatprep.subr.mxu0 0.0
        %883 = vmatpush1.msra.mxu0 0.0
        %884 = vmatprep.subr.mxu0 0.0
        %885 = vmatpush1.msra.mxu0 0.0
        %886 = vmatprep.subr.mxu0 0.0
        %887 = vmatpush1.msra.mxu0 0.0
        %888 = vmatprep.subr.mxu0 0.0
        %889 = vmatpush1.msra.mxu0 0.0
        %890 = vmatprep.subr.mxu0 0.0
        %891 = vmatpush1.msra.mxu0 0.0
        %892 = vmatprep.subr.mxu0 0.0
        %893 = vmatpush1.msra.mxu0 0.0
        %894 = vmatprep.subr.mxu0 0.0
        %895 = vmatpush1.msra.mxu0 0.0
        %896 = vmatprep.subr.mxu0 0.0
        %897 = vmatpush1.msra.mxu0 0.0
        %898 = vmatprep.subr.mxu0 0.0
        %899 = vmatpush1.msra.mxu0 0.0
        %900 = vmatprep.mubr.f32.mxu0 0.0
        %901 = vmatmul.mubr.f32.gmra.mrb[0].mxu0 %v831
        %v902 = vpop.f32.mrb[0].mxu0
        %v903 = vadd.f32 0.0, %v902
        %v904 = vpop.f32.mrb[0].mxu0
        %905 = vmatprep.mubr.f32.mxu0 0.0
        %906 = vmatmul.mubr.f32.gmra.mrb[0].mxu0 %v834
        %v907 = vpop.f32.mrb[0].mxu0
        %v908 = vadd.f32 0.0, %v907
        %v909 = vpop.f32.mrb[0].mxu0
        %910 = vdwg.mxu0
        %911 = vst.msk [vmem:[%s452] sm:$0xff] %vm694, %v745
        %912 = vst.msk [vmem:[%s452 + $0x8] sm:$0xff] %vm694, %v746
        %913 = vst.msk [vmem:[%s452 + $0x10] sm:$0xff] %vm694, %v747
        %914 = vst.msk [vmem:[%s452 + $0x18] sm:$0xff] %vm694, %v748
        %915 = vst.msk [vmem:[%s445] sm:$0xff] %vm492, %v822
        %916 = vst.msk [vmem:[%s445 + $0x8] sm:$0xff] %vm492, %v827
        %917 = vst.msk [vmem:[%s445 + $0x10] sm:$0xff] %vm492, %v903
        %918 = vst.msk [vmem:[%s445 + $0x18] sm:$0xff] %vm492, %v908
        %s919 = sand.u32 %s213, 1
        %s920 = scalar_lea.sflag [#allocation4], %s919
        %s921 = sand.u32 %s213, 1
        %s922 = smul.addr %s921, 32
        %s923 = scalar_lea.vmem [#allocation8], %s922
        %s924 = sand.u32 %s241, 1
        %s925 = scalar_lea.sflag [#allocation10], %s924
        %s926 = sand.u32 %s241, 1
        %s927 = smul.addr %s926, 32
        %s928 = scalar_lea.vmem [#allocation9], %s927
        // Predicated region
        $region57: #{tpu_custom_call.1} parent=43 // pred_check
          %p929 = pneg %p223
        $region58: #{tpu_custom_call.1} parent=43 // pred_check_branch
          %931 = sbr.rel (%p929) target = $region60
        $region59: #{tpu_custom_call.1} parent=43 // pred_region
          %s932 = smul.u32 2, %s36
          %s934 = ssub.s32 512, 512
          %935 = vsyncadd %s920, %s934
          %s936 = smul.addr %s35, 4
          %s937 = sadd.s32 %s932, %s936
          %s938 = smul.addr %s937, 128
          %s939 = scalar_lea.hbm %s6, %s938
          %s940 = sshll.u32 %s923, 4
          %s941 = int_to_ptr.vmem [resolvable:$true] %s940
          %946 = dma.vmem_to_hbm [thread:$0]  %s941, 512, %s939, %s920, 128, 128, 8
        $region60: #{tpu_custom_call.1} parent=43 // pred_fallthru
          _
        // Predicated region
        $region61: #{tpu_custom_call.1} parent=43 // pred_check
          %p947 = pneg %p251
        $region62: #{tpu_custom_call.1} parent=43 // pred_check_branch
          %949 = sbr.rel (%p947) target = $region64
        $region63: #{tpu_custom_call.1} parent=43 // pred_region
          %s950 = smul.u32 2, %s36
          %s952 = ssub.s32 512, 512
          %953 = vsyncadd %s925, %s952
          %s954 = smul.addr %s35, 4
          %s955 = sadd.s32 %s950, %s954
          %s956 = smul.addr %s955, 128
          %s957 = scalar_lea.hbm %s7, %s956
          %s958 = sshll.u32 %s928, 4
          %s959 = int_to_ptr.vmem [resolvable:$true] %s958
          %964 = dma.vmem_to_hbm [thread:$0]  %s959, 512, %s957, %s925, 128, 128, 8
        $region64: #{tpu_custom_call.1} parent=43 // pred_fallthru
          _
      $region44: #{tpu_custom_call.1} parent=5 // pred_fallthru
        _
      %p965 = scmp.le.s32.totalorder 2, %s26
      // Predicated region
      $region65: #{tpu_custom_call.1} parent=5 // pred_check
        %p966 = pneg %p965
      $region66: #{tpu_custom_call.1} parent=5 // pred_check_branch
        %968 = sbr.rel (%p966) target = $region68
      $region67: #{tpu_custom_call.1} parent=5 // pred_region
        %s969 = ssub.s32 %s26, 2
        // Predicated region
        $region69: #{tpu_custom_call.1} parent=67 // pred_check
          %p970 = pneg %p229
        $region70: #{tpu_custom_call.1} parent=67 // pred_check_branch
          %972 = sbr.rel (%p970) target = $region72
        $region71: #{tpu_custom_call.1} parent=67 // pred_region
          %s973 = sand.u32 %s214, 1
          %s974 = scalar_lea.sflag [#allocation4], %s973
          %s975 = sand.u32 %s214, 1
          %s976 = smul.addr %s975, 32
          %s977 = scalar_lea.vmem [#allocation8], %s976
          %978 = dma.done %s974, 512
        $region72: #{tpu_custom_call.1} parent=67 // pred_fallthru
          _
        // Predicated region
        $region73: #{tpu_custom_call.1} parent=67 // pred_check
          %p979 = pneg %p257
        $region74: #{tpu_custom_call.1} parent=67 // pred_check_branch
          %981 = sbr.rel (%p979) target = $region76
        $region75: #{tpu_custom_call.1} parent=67 // pred_region
          %s982 = sand.u32 %s242, 1
          %s983 = scalar_lea.sflag [#allocation10], %s982
          %s984 = sand.u32 %s242, 1
          %s985 = smul.addr %s984, 32
          %s986 = scalar_lea.vmem [#allocation9], %s985
          %987 = dma.done %s983, 512
        $region76: #{tpu_custom_call.1} parent=67 // pred_fallthru
          _
      $region68: #{tpu_custom_call.1} parent=5 // pred_fallthru
        _
    $region6: #{tpu_custom_call.1} parent=1 // loop_footer
      %s30 = sadd.s32 1, %s26
    $region7: #{tpu_custom_call.1} parent=1 // loop_footer_branch
      %25 = sbr.rel target = $region3
    $region8: #{tpu_custom_call.1} parent=1 // loop_exit
      _
    %988 = vsyncpa [#allocation3], 1
    %s989 = scalar_lea.sflag [#allocation3], 1
    %990 = vsyncpa %s989, 1
    %991 = vsyncpa [#allocation6], 1
    %s992 = scalar_lea.sflag [#allocation6], 1
    %993 = vsyncpa %s992, 1
    %994 = vsyncpa [#allocation4], 1
    %s995 = scalar_lea.sflag [#allocation4], 1
    %996 = vsyncpa %s995, 1
    %997 = vsyncpa [#allocation10], 1
    %s998 = scalar_lea.sflag [#allocation10], 1
    %999 = vsyncpa %s998, 1

</llo_original>
